<compile_context>
chip_gen: v7x
topology: tpu7x:2x2x1
jax: 0.10.0
libtpu: 0.0.40
codegen_flags: <defaults>
</compile_context>

<pallas_src>
import jax
import jax.numpy as jnp
from jax.experimental import pallas as pl
from jax.experimental.pallas import tpu as pltpu


def _round_up(n, m):
    return ((n + m - 1) // m) * m


def _cdiv(a, b):
    return (a + b - 1) // b


def _sublane(dtype):
    # Packed-sublane multiple: 8 for f32, 16 for bf16, 32 for int8/fp8.
    return max(8, 32 // jnp.dtype(dtype).itemsize)


def _chip_config():
    """Generation-aware defaults: row tile, scoped-VMEM cap, #TensorCores."""
    try:
        kind = jax.devices()[0].device_kind.lower()
    except Exception:  # pragma: no cover - defensive
        kind = ""
    if "v7" in kind:
        # 64 MiB VMEM/TC: leave real headroom; 2 TCs share the chip.
        return dict(gen="v7x", vmem_cap=52 << 20, tm=256, two_tc=True)
    if "v6" in kind:
        # 128 MiB VMEM, ~1.4 TB/s HBM: needs big tm to be compute-bound.
        return dict(gen="v6e", vmem_cap=100 << 20, tm=512, two_tc=False)
    if "v5 lite" in kind or "v5e" in kind or "v5lite" in kind:
        # 128 MiB VMEM, low roofline: tm=256 already near compute-bound.
        return dict(gen="v5e", vmem_cap=100 << 20, tm=256, two_tc=False)
    return dict(gen="unknown", vmem_cap=48 << 20, tm=256, two_tc=False)


def default_tile_f(F, want=256):
    """Largest multiple of 128 that divides F and is <= want (else F)."""
    best = None
    t = 128
    while t <= min(F, want):
        if F % t == 0:
            best = t
        t += 128
    return best if best is not None else F


def pack_weights(w_gate, w_up, *, tf, dtype=None):
    """One-time (model-load) packing of gate/up projections.

    Input: torch nn.Linear layout [out_features=F, in_features=H].
    Output: (H, 2*F) — per F tile, tf gate columns followed by tf up columns —
    so the in-kernel gate/up matmul is a canonical [M,K]x[K,N] with no
    per-call transposes.  Optionally casts (e.g. to bf16) at pack time.
    """
    F, H = w_gate.shape
    assert w_up.shape == (F, H)
    assert F % tf == 0
    nf = F // tf
    packed = jnp.concatenate(
        [w_gate.reshape(nf, tf, H), w_up.reshape(nf, tf, H)], axis=1
    ).reshape(2 * F, H)
    packed = packed.T  # (H, 2*F), materialized once at load time
    if dtype is not None:
        packed = packed.astype(dtype)
    return packed


def pack_down(w_down, *, dtype=None):
    """One-time transpose of the down projection: torch (H, F) -> (F, H)."""
    wd = w_down.T
    if dtype is not None:
        wd = wd.astype(dtype)
    return wd


def _packed_mlp_kernel(x_ref, wgu_ref, wd_ref, o_ref, acc_ref):
    """One (row-tile, F-tile) step of the fused SwiGLU MLP.

    x_ref  : (tm, H)      activation row tile (resident across the F axis)
    wgu_ref: (H, 2*tf)    packed [gate | up] weight tile (pre-transposed)
    wd_ref : (tf, H)      down-projection weight tile (pre-transposed)
    o_ref  : (tm, H)      output row tile (written on the last F step)
    acc_ref: (tm, H) f32  VMEM accumulator for the down projection
    """
    f = pl.program_id(1)
    tf = wd_ref.shape[0]

    x = x_ref[...]
    # If weights were packed in a narrower dtype (bf16), cast x on the VPU so
    # both MXU passes run at the fast precision; accumulation stays f32.
    if x.dtype != wgu_ref.dtype:
        x = x.astype(wgu_ref.dtype)

    # Single canonical [M,K]x[K,N] MXU pass of x against the packed gate/up tile.
    y = jnp.dot(x, wgu_ref[...], preferred_element_type=jnp.float32)  # (tm, 2*tf)
    g = y[:, :tf]
    u = y[:, tf:]

    # SwiGLU in f32: sigmoid -> EUP, muls -> VPU.
    h = (g * jax.nn.sigmoid(g)) * u

    # Partial down projection for this F tile (canonical layout, f32 accumulate).
    partial = jnp.dot(h.astype(wd_ref.dtype), wd_ref[...],
                      preferred_element_type=jnp.float32)  # (tm, H)

    @pl.when(f == 0)
    def _first():
        acc_ref[...] = partial          # no zero-init store + reload

    @pl.when(f > 0)
    def _accum():
        acc_ref[...] += partial

    @pl.when(f == pl.num_programs(1) - 1)
    def _finalize():
        o_ref[...] = acc_ref[...].astype(o_ref.dtype)


def packed_mlp(x, w_gu, w_down_t, *, tf, tm=None):
    """Fused SwiGLU MLP.

    x        : [B, S, H] activations (f32 or bf16).
    w_gu     : [H, 2*F]  from pack_weights(w_gate, w_up, tf=tf).
    w_down_t : [F, H]    from pack_down(w_down).
    tf       : F tile size used at pack time (multiple of 128, divides F).
    tm       : row tile size; default is generation-aware.
    """
    B, S, H = x.shape
    H2, F2 = w_gu.shape
    F = F2 // 2
    assert H2 == H and w_down_t.shape == (F, H)
    assert F % tf == 0 and (tf % 128 == 0 or tf == F)
    assert H % 128 == 0, "hidden dim should be lane-aligned (multiple of 128)"

    cfg = _chip_config()
    if tm is None:
        tm = cfg["tm"]

    sub = _sublane(x.dtype)
    M = B * S
    # Clamp the row tile for tiny inputs; keep it a sublane multiple.
    tm = _round_up(min(tm, _round_up(M, sub)), sub)
    # v7x: two TensorCores share the 'parallel' row axis — make sure there are
    # at least 2 row tiles whenever M allows, otherwise one TC sits idle.
    if cfg["two_tc"] and _round_up(M, tm) // tm < 2:
        tm_half = _round_up(max(_cdiv(M, 2), sub), sub)
        if tm_half < tm:
            tm = tm_half
    Mp = _round_up(M, tm)

    x2 = x.reshape(M, H)
    ragged = Mp != M
    if ragged:
        # TODO(synk): a masked partial last row tile would avoid this pad/slice.
        x2 = jnp.pad(x2, ((0, Mp - M), (0, 0)))

    nf = F // tf
    n_row_tiles = Mp // tm
    act_bytes = x2.dtype.itemsize
    wgu_bytes = w_gu.dtype.itemsize
    wd_bytes = w_down_t.dtype.itemsize

    # VMEM budget: double-buffered tiles + accumulator + spilled f32 temps.
    vmem_est = (2 * tm * H * act_bytes              # x tile
                + 2 * H * (2 * tf) * wgu_bytes      # packed gate/up tile
                + 2 * tf * H * wd_bytes             # down tile
                + 2 * tm * H * act_bytes            # output tile
                + tm * H * 4                        # f32 accumulator scratch
                + tm * (2 * tf) * 4                 # y (gate/up dot result)
                + tm * tf * 4                       # h (SwiGLU intermediate)
                + tm * H * 4)                       # down partial before accumulate
    headroom = 8 << 20                              # compiler internal scratch
    assert vmem_est + headroom <= cfg["vmem_cap"], (
        f"tile config tm={tm}, tf={tf} needs ~{(vmem_est + headroom) >> 20} MiB "
        f"VMEM, over the {cfg['vmem_cap'] >> 20} MiB budget for {cfg['gen']}; "
        "shrink tm or tf")
    vmem_limit = int(min(cfg["vmem_cap"], max(vmem_est + headroom, 32 << 20)))

    # Weights are re-streamed from HBM once per ROW TILE.
    cost = pl.CostEstimate(
        flops=6 * Mp * H * F,
        transcendentals=Mp * F,
        bytes_accessed=int(2 * Mp * H * act_bytes
                           + n_row_tiles * (2 * F * H * wgu_bytes
                                            + F * H * wd_bytes)),
    )

    out = pl.pallas_call(
        _packed_mlp_kernel,
        out_shape=jax.ShapeDtypeStruct((Mp, H), x.dtype),
        grid_spec=pltpu.PrefetchScalarGridSpec(
            num_scalar_prefetch=0,
            grid=(n_row_tiles, nf),                 # rows parallel, F reduction last
            in_specs=[
                pl.BlockSpec((tm, H), lambda i, f: (i, 0)),        # x row tile
                pl.BlockSpec((H, 2 * tf), lambda i, f: (0, f)),    # packed gate/up
                pl.BlockSpec((tf, H), lambda i, f: (f, 0)),        # down tile
            ],
            out_specs=pl.BlockSpec((tm, H), lambda i, f: (i, 0)),
            scratch_shapes=[pltpu.VMEM((tm, H), jnp.float32)],
        ),
        compiler_params=pltpu.CompilerParams(
            dimension_semantics=("parallel", "arbitrary"),
            vmem_limit_bytes=vmem_limit),
        cost_estimate=cost,
    )(x2, w_gu, w_down_t)

    if ragged:
        out = out[:M]
    return out.reshape(B, S, H)


def packed_mlp_ref(x, w_gate, w_up, w_down):
    """Pure-JAX reference (torch semantics: y = x @ W.T)."""
    g = jnp.einsum("bsh,fh->bsf", x, w_gate)
    u = jnp.einsum("bsh,fh->bsf", x, w_up)
    h = jax.nn.silu(g) * u
    return jnp.einsum("bsf,hf->bsh", h, w_down)


if __name__ == "__main__":
    # Small, lane-aligned demo shapes; S=9 exercises the ragged-M path and
    # tf < F exercises the F-tiled accumulator path.
    B, S, H, F = 2, 9, 256, 512
    TF = default_tile_f(F)          # -> 256

    key = jax.random.PRNGKey(0)
    kx, kg, ku, kd = jax.random.split(key, 4)

    x = jax.random.normal(kx, (B, S, H), dtype=jnp.float32)
    # torch.nn.Linear layout [out_features, in_features]
    w_gate = jax.random.normal(kg, (F, H), dtype=jnp.float32) * 0.05
    w_up = jax.random.normal(ku, (F, H), dtype=jnp.float32) * 0.05
    w_down = jax.random.normal(kd, (H, F), dtype=jnp.float32) * 0.05

    # One-time packing (model-load step, not per forward call).  Pass
    # dtype=jnp.bfloat16 here to run both MXU passes in bf16 with f32 accumulate.
    w_gu = pack_weights(w_gate, w_up, tf=TF)
    w_dn = pack_down(w_down)

    out = packed_mlp(x, w_gu, w_dn, tf=TF)
    out = jax.block_until_ready(out)

    ref = packed_mlp_ref(x, w_gate, w_up, w_down)
    assert out.shape == (B, S, H)
    assert jnp.allclose(out, ref, atol=2e-3, rtol=2e-3), "mismatch vs reference"

    print("KERNEL_OK")
</pallas_src>

<mosaic_0001>
module attributes {stable_mosaic.version = 11 : i64} {
  func.func @_packed_mlp_kernel(%arg0: i32, %arg1: i32, %arg2: memref<24x256xf32, #tpu.memory_space<vmem>>, %arg3: memref<256x512xf32, #tpu.memory_space<vmem>>, %arg4: memref<256x256xf32, #tpu.memory_space<vmem>>, %arg5: memref<24x256xf32, #tpu.memory_space<vmem>>, %arg6: memref<24x256xf32, #tpu.memory_space<vmem>>) attributes {dimension_semantics = [#tpu.dimension_semantics<parallel>, #tpu.dimension_semantics<arbitrary>], iteration_bounds = array<i64: 1, 2>, scalar_prefetch = 0 : i64, scratch_operands = 1 : i64, tpu.core_type = #tpu.core_type<tc>, window_params = [{transform_indices = @transform_0, window_bounds = array<i64: 24, 256>}, {transform_indices = @transform_1, window_bounds = array<i64: 256, 512>}, {transform_indices = @transform_2, window_bounds = array<i64: 256, 256>}, {transform_indices = @transform_3, window_bounds = array<i64: 24, 256>}]} {
    %c0 = arith.constant 0 : index
    %c0_0 = arith.constant 0 : index
    %0 = vector.load %arg2[%c0, %c0_0] : memref<24x256xf32, #tpu.memory_space<vmem>>, vector<24x256xf32>
    %c0_1 = arith.constant 0 : index
    %c0_2 = arith.constant 0 : index
    %1 = vector.load %arg3[%c0_1, %c0_2] : memref<256x512xf32, #tpu.memory_space<vmem>>, vector<256x512xf32>
    %cst = arith.constant dense<0.000000e+00> : vector<24x512xf32>
    %2 = tpu.matmul %0, %1, %cst {dimension_numbers = #tpu.dot_dimension_numbers<[1], [0], [0], [1], [0, 0, 1, 1], [], []>} : vector<24x256xf32>, vector<256x512xf32>, vector<24x512xf32> -> vector<24x512xf32>
    %3 = vector.extract_strided_slice %2 {offsets = [0, 0], sizes = [24, 256], strides = [1, 1]} : vector<24x512xf32> to vector<24x256xf32>
    %4 = vector.extract_strided_slice %2 {offsets = [0, 256], sizes = [24, 256], strides = [1, 1]} : vector<24x512xf32> to vector<24x256xf32>
    %5 = arith.negf %3 : vector<24x256xf32>
    %6 = math.exp %5 : vector<24x256xf32>
    %cst_3 = arith.constant 1.000000e+00 : f32
    %7 = vector.broadcast %cst_3 : f32 to vector<24x256xf32>
    %8 = arith.addf %7, %6 : vector<24x256xf32>
    %9 = arith.divf %7, %8 : vector<24x256xf32>
    %10 = arith.mulf %3, %9 : vector<24x256xf32>
    %11 = arith.mulf %10, %4 : vector<24x256xf32>
    %c0_4 = arith.constant 0 : index
    %c0_5 = arith.constant 0 : index
    %12 = vector.load %arg4[%c0_4, %c0_5] : memref<256x256xf32, #tpu.memory_space<vmem>>, vector<256x256xf32>
    %cst_6 = arith.constant dense<0.000000e+00> : vector<24x256xf32>
    %13 = tpu.matmul %11, %12, %cst_6 {dimension_numbers = #tpu.dot_dimension_numbers<[1], [0], [0], [1], [0, 0, 1, 1], [], []>} : vector<24x256xf32>, vector<256x256xf32>, vector<24x256xf32> -> vector<24x256xf32>
    %c0_i32 = arith.constant 0 : i32
    %14 = arith.cmpi eq, %arg1, %c0_i32 : i32
    %15 = arith.extui %14 : i1 to i32
    %c0_i32_7 = arith.constant 0 : i32
    %16 = arith.cmpi ne, %15, %c0_i32_7 : i32
    scf.if %16 {
      %c0_11 = arith.constant 0 : index
      %c0_12 = arith.constant 0 : index
      %23 = vector.load %arg6[%c0_11, %c0_12] : memref<24x256xf32, #tpu.memory_space<vmem>>, vector<24x256xf32>
      tpu.vector_store %arg6[%c0_11, %c0_12], %13 {strides = array<i32>} : memref<24x256xf32, #tpu.memory_space<vmem>>, vector<24x256xf32>,
    } else {
    }
    %c0_i32_8 = arith.constant 0 : i32
    %17 = arith.cmpi sgt, %arg1, %c0_i32_8 : i32
    %18 = arith.extui %17 : i1 to i32
    %c0_i32_9 = arith.constant 0 : i32
    %19 = arith.cmpi ne, %18, %c0_i32_9 : i32
    scf.if %19 {
      %c0_11 = arith.constant 0 : index
      %c0_12 = arith.constant 0 : index
      %23 = vector.load %arg6[%c0_11, %c0_12] : memref<24x256xf32, #tpu.memory_space<vmem>>, vector<24x256xf32>
      %24 = arith.addf %23, %13 : vector<24x256xf32>
      %c0_13 = arith.constant 0 : index
      %c0_14 = arith.constant 0 : index
      %25 = vector.load %arg6[%c0_13, %c0_14] : memref<24x256xf32, #tpu.memory_space<vmem>>, vector<24x256xf32>
      tpu.vector_store %arg6[%c0_13, %c0_14], %24 {strides = array<i32>} : memref<24x256xf32, #tpu.memory_space<vmem>>, vector<24x256xf32>,
    } else {
    }
    %c1_i32 = arith.constant 1 : i32
    %20 = arith.cmpi eq, %arg1, %c1_i32 : i32
    %21 = arith.extui %20 : i1 to i32
    %c0_i32_10 = arith.constant 0 : i32
    %22 = arith.cmpi ne, %21, %c0_i32_10 : i32
    scf.if %22 {
      %c0_11 = arith.constant 0 : index
      %c0_12 = arith.constant 0 : index
      %23 = vector.load %arg6[%c0_11, %c0_12] : memref<24x256xf32, #tpu.memory_space<vmem>>, vector<24x256xf32>
      %c0_13 = arith.constant 0 : index
      %c0_14 = arith.constant 0 : index
      %24 = vector.load %arg5[%c0_13, %c0_14] : memref<24x256xf32, #tpu.memory_space<vmem>>, vector<24x256xf32>
      tpu.vector_store %arg5[%c0_13, %c0_14], %23 {strides = array<i32>} : memref<24x256xf32, #tpu.memory_space<vmem>>, vector<24x256xf32>,
    } else {
    }
    return
  }
  func.func @transform_0(%arg0: i32, %arg1: i32) -> (i32, i32) {
    %c0_i32 = arith.constant 0 : i32
    %c0_i32_0 = arith.constant 0 : i32
    return %arg0, %c0_i32 : i32, i32
  }
  func.func @transform_1(%arg0: i32, %arg1: i32) -> (i32, i32) {
    %c0_i32 = arith.constant 0 : i32
    %c0_i32_0 = arith.constant 0 : i32
    return %c0_i32, %arg1 : i32, i32
  }
  func.func @transform_2(%arg0: i32, %arg1: i32) -> (i32, i32) {
    %c0_i32 = arith.constant 0 : i32
    %c0_i32_0 = arith.constant 0 : i32
    return %arg1, %c0_i32 : i32, i32
  }
  func.func @transform_3(%arg0: i32, %arg1: i32) -> (i32, i32) {
    %c0_i32 = arith.constant 0 : i32
    %c0_i32_0 = arith.constant 0 : i32
    return %arg0, %c0_i32 : i32, i32
  }
}

</mosaic_0001>

<llo_original>
// kernel: tpu_custom_call.1
$region0: #{tpu_custom_call.1}
  #allocation0 [shape = 'u32[]', space=smem, size = 0x4, offset = 0x4, fixed_abs, tag = 'smem constant byte address 0x4 - core index']
  #allocation1 [shape = 'u32[144,128]{1,0:T(1,128)}', space=vmem, size = 0x12000, scoped, tag = 'internal scratch']
  #allocation2 [shape = 'f32[24,256]{1,0:T(8,128)}', space=vmem, size = 0x6000, scoped, tag = 'scratch operand']
  %s0 = inlined_call_operand.hbm [shape: f32[24,256], index: 0, kind: input, shape index: {}]
  %s1 = inlined_call_operand.hbm [shape: f32[256,1024], index: 1, kind: input, shape index: {}]
  %s2 = inlined_call_operand.hbm [shape: f32[512,256], index: 2, kind: input, shape index: {}]
  %s3 = inlined_call_operand.hbm [shape: f32[24,256], index: 3, kind: output, shape index: {}]
  %s4 = sld [smem:[#allocation0]]
  $region69: #{tpu_custom_call.1} parent=0
    _
  %s6 = ssub.s32 1, %s4
  %s7 = scalar_select 0, %s6, %s4
  $region1: #{tpu_custom_call.1} parent=0
    #allocation3 [shape = 'u8[24576]{0}', space=vmem, size = 0x6000, scoped, tag = 'input window, operand 0, single buffered']
    #allocation4 [shape = 's32[2]{0}', space=sflag, size = 0x8, scoped, tag = 'scoped memory for tpu_custom_call.1']
    #allocation5 [shape = 's32[2]{0}', space=sflag, size = 0x8, scoped, tag = 'scoped memory for tpu_custom_call.1']
    #allocation6 [shape = 'u8[1048576]{0}', space=vmem, size = 0x100000, scoped, tag = 'input window, operand 1']
    #allocation7 [shape = 's32[2]{0}', space=sflag, size = 0x8, scoped, tag = 'scoped memory for tpu_custom_call.1']
    #allocation8 [shape = 'u8[524288]{0}', space=vmem, size = 0x80000, scoped, tag = 'input window, operand 2']
    #allocation9 [shape = 'u8[24576]{0}', space=vmem, size = 0x6000, scoped, tag = 'output window, operand 0, single buffered']
    %8 = vsyncpa [#allocation4], 0
    %9 = vsyncpa [#allocation7], 0
    %s10 = scalar_lea.sflag [#allocation7], 1
    %11 = vsyncpa %s10, 0
    %12 = vsyncpa [#allocation5], 0
    loop: start=0, step=1, limit=4
    $region2: #{tpu_custom_call.1} parent=1 // loop_pre_header
      _
    $region3: #{tpu_custom_call.1} parent=1 // loop_header
      %s14 = sphi 0, %s18
      %p15 = scmp.ge.s32.totalorder %s14, 4
      %s21 = sphi 0, %s33
      %s22 = sphi 0, %s29
      %s23 = sphi 0, %s21
      %s24 = sphi 0, %s22
      %s25 = sphi 0, %s23
      %s26 = sphi 0, %s24
      %s36 = sphi 0, %s38
      %s39 = sphi 0, %s36
      %s40 = sphi 0, %s39
      %s56 = sphi 0, %s40
      %s62 = sphi 0, %s64
      %s65 = sphi 0, %s62
      %s66 = sphi 0, %s65
      %s82 = sphi 0, %s66
      %s88 = sphi 0, %s90
      %s91 = sphi 0, %s88
      %s92 = sphi 0, %s91
      %s108 = sphi 0, %s92
      %s114 = sphi 0, %s116
      %s117 = sphi 0, %s114
      %s118 = sphi 0, %s117
      %s134 = sphi 0, %s118
    $region4: #{tpu_custom_call.1} parent=1 // loop_header_branch
      %17 = sbr.rel (%p15) target = $region8
    $region5: #{tpu_custom_call.1} parent=1 // loop_body
      %s19 = ssub.s32 %s14, 1
      %s20 = ssub.s32 %s14, 2
      %s27 = sadd.s32 1, %s22
      %p28 = scmp.ge.s32.totalorder %s27, 2
      %s29 = scalar_select %p28, 0, %s27
      %s30 = sadd.s32 1, %s21
      %s31 = scalar_select %p28, %s30, %s21
      %p32 = scmp.ge.s32.totalorder %s31, 1
      %s33 = scalar_select %p32, 0, %s31
      %s34 = ssub.s32 %s21, %s33
      %p35 = scmp.eq.s32.totalorder %s34, 0
      %s37 = sadd.s32 %s36, 1
      %s38 = scalar_select %p35, %s36, %s37
      %p41 = pneg %p35
      %p42 = scmp.eq.s32.totalorder %s14, 1
      %p43 = por %p41, %p42
      %p44 = scmp.ne.s32.totalorder %s36, %s39
      %p45 = scmp.eq.s32.totalorder %s14, 0
      %p46 = por %p44, %p45
      %p47 = scmp.ne.s32.totalorder %s36, %s39
      %p48 = scmp.eq.s32.totalorder %s19, 1
      %p49 = por %p47, %p48
      %p50 = scmp.ne.s32.totalorder %s39, %s40
      %p51 = scmp.eq.s32.totalorder %s19, 0
      %p52 = por %p50, %p51
      %p53 = scmp.ne.s32.totalorder %s39, %s40
      %p54 = scmp.eq.s32.totalorder %s20, 1
      %p55 = por %p53, %p54
      %p57 = scmp.ne.s32.totalorder %s40, %s56
      %p58 = scmp.eq.s32.totalorder %s20, 0
      %p59 = por %p57, %p58
      %s60 = ssub.s32 %s22, %s29
      %p61 = scmp.eq.s32.totalorder %s60, 0
      %s63 = sadd.s32 %s62, 1
      %s64 = scalar_select %p61, %s62, %s63
      %p67 = pneg %p61
      %p68 = scmp.eq.s32.totalorder %s14, 1
      %p69 = por %p67, %p68
      %p70 = scmp.ne.s32.totalorder %s62, %s65
      %p71 = scmp.eq.s32.totalorder %s14, 0
      %p72 = por %p70, %p71
      %p73 = scmp.ne.s32.totalorder %s62, %s65
      %p74 = scmp.eq.s32.totalorder %s19, 1
      %p75 = por %p73, %p74
      %p76 = scmp.ne.s32.totalorder %s65, %s66
      %p77 = scmp.eq.s32.totalorder %s19, 0
      %p78 = por %p76, %p77
      %p79 = scmp.ne.s32.totalorder %s65, %s66
      %p80 = scmp.eq.s32.totalorder %s20, 1
      %p81 = por %p79, %p80
      %p83 = scmp.ne.s32.totalorder %s66, %s82
      %p84 = scmp.eq.s32.totalorder %s20, 0
      %p85 = por %p83, %p84
      %s86 = ssub.s32 %s22, %s29
      %p87 = scmp.eq.s32.totalorder %s86, 0
      %s89 = sadd.s32 %s88, 1
      %s90 = scalar_select %p87, %s88, %s89
      %p93 = pneg %p87
      %p94 = scmp.eq.s32.totalorder %s14, 1
      %p95 = por %p93, %p94
      %p96 = scmp.ne.s32.totalorder %s88, %s91
      %p97 = scmp.eq.s32.totalorder %s14, 0
      %p98 = por %p96, %p97
      %p99 = scmp.ne.s32.totalorder %s88, %s91
      %p100 = scmp.eq.s32.totalorder %s19, 1
      %p101 = por %p99, %p100
      %p102 = scmp.ne.s32.totalorder %s91, %s92
      %p103 = scmp.eq.s32.totalorder %s19, 0
      %p104 = por %p102, %p103
      %p105 = scmp.ne.s32.totalorder %s91, %s92
      %p106 = scmp.eq.s32.totalorder %s20, 1
      %p107 = por %p105, %p106
      %p109 = scmp.ne.s32.totalorder %s92, %s108
      %p110 = scmp.eq.s32.totalorder %s20, 0
      %p111 = por %p109, %p110
      %s112 = ssub.s32 %s21, %s33
      %p113 = scmp.eq.s32.totalorder %s112, 0
      %s115 = sadd.s32 %s114, 1
      %s116 = scalar_select %p113, %s114, %s115
      %p119 = pneg %p113
      %p120 = scmp.eq.s32.totalorder %s14, 1
      %p121 = por %p119, %p120
      %p122 = scmp.ne.s32.totalorder %s114, %s117
      %p123 = scmp.eq.s32.totalorder %s14, 0
      %p124 = por %p122, %p123
      %p125 = scmp.ne.s32.totalorder %s114, %s117
      %p126 = scmp.eq.s32.totalorder %s19, 1
      %p127 = por %p125, %p126
      %p128 = scmp.ne.s32.totalorder %s117, %s118
      %p129 = scmp.eq.s32.totalorder %s19, 0
      %p130 = por %p128, %p129
      %p131 = scmp.ne.s32.totalorder %s117, %s118
      %p132 = scmp.eq.s32.totalorder %s20, 1
      %p133 = por %p131, %p132
      %p135 = scmp.ne.s32.totalorder %s118, %s134
      %p136 = scmp.eq.s32.totalorder %s20, 0
      %p137 = por %p135, %p136
      %p138 = scmp.le.s32.totalorder 1, %s14
      %p139 = scmp.lt.s32.totalorder %s14, 3
      %p140 = pnand %p138, %p139
      %p141 = pneg %p140
      // Predicated region
      $region9: #{tpu_custom_call.1} parent=5 // pred_check
        _
      $region10: #{tpu_custom_call.1} parent=5 // pred_check_branch
        %143 = sbr.rel (%p140) target = $region12
      $region11: #{tpu_custom_call.1} parent=5 // pred_region
        %s144 = ssub.s32 %s14, 1
        // Predicated region
        $region13: #{tpu_custom_call.1} parent=11 // pred_check
          %p145 = pneg %p52
        $region14: #{tpu_custom_call.1} parent=11 // pred_check_branch
          %147 = sbr.rel (%p145) target = $region16
        $region15: #{tpu_custom_call.1} parent=11 // pred_region
          %s148 = smul.u32 3, %s23
          %s150 = ssub.s32 768, 768
          %151 = vsyncadd [#allocation4], %s150
          %s152 = smul.addr %s148, 2
          %s153 = smul.addr %s152, 128
          %s154 = scalar_lea.hbm %s0, %s153
          %s155 = sshll.u32 [#allocation3], 4
          %s156 = int_to_ptr.vmem [resolvable:$true] %s155
          %161 = dma.hbm_to_vmem [thread:$0]  %s154, 768, %s156, [#allocation4], 256, 256, 16
        $region16: #{tpu_custom_call.1} parent=11 // pred_fallthru
          _
      $region12: #{tpu_custom_call.1} parent=5 // pred_fallthru
        _
      %p162 = scmp.lt.s32.totalorder %s14, 2
      // Predicated region
      $region17: #{tpu_custom_call.1} parent=5 // pred_check
        %p163 = pneg %p162
      $region18: #{tpu_custom_call.1} parent=5 // pred_check_branch
        %165 = sbr.rel (%p163) target = $region20
      $region19: #{tpu_custom_call.1} parent=5 // pred_region
        // Predicated region
        $region21: #{tpu_custom_call.1} parent=19 // pred_check
          %p166 = pneg %p72
        $region22: #{tpu_custom_call.1} parent=19 // pred_check_branch
          %168 = sbr.rel (%p166) target = $region24
        $region23: #{tpu_custom_call.1} parent=19 // pred_region
          %s169 = sand.u32 %s14, 1
          %s170 = scalar_lea.sflag [#allocation7], %s169
          %s171 = sand.u32 %s62, 1
          %s172 = smul.addr %s171, 1024
          %s173 = scalar_lea.vmem [#allocation6], %s172
          %s174 = smul.u32 4, %s22
          %s176 = ssub.s32 16384, 16384
          %177 = vsyncadd %s170, %s176
          %s178 = smul.addr %s174, 128
          %s179 = scalar_lea.hbm %s1, %s178
          %s180 = sshll.u32 %s173, 4
          %s181 = int_to_ptr.vmem [resolvable:$true] %s180
          %186 = dma.hbm_to_vmem [thread:$0]  %s179, 16384, %s181, %s170, 1024, 512, 32
        $region24: #{tpu_custom_call.1} parent=19 // pred_fallthru
          _
        // Predicated region
        $region25: #{tpu_custom_call.1} parent=19 // pred_check
          %p187 = pneg %p98
        $region26: #{tpu_custom_call.1} parent=19 // pred_check_branch
          %189 = sbr.rel (%p187) target = $region28
        $region27: #{tpu_custom_call.1} parent=19 // pred_region
          %s190 = sand.u32 %s14, 1
          %s191 = scalar_lea.sflag [#allocation7], %s190
          %s192 = sand.u32 %s88, 1
          %s193 = smul.addr %s192, 512
          %s194 = scalar_lea.vmem [#allocation8], %s193
          %s195 = smul.u32 32, %s22
          %s197 = ssub.s32 8192, 8192
          %198 = vsyncadd %s191, %s197
          %s199 = smul.addr %s195, 2
          %s200 = smul.addr %s199, 128
          %s201 = scalar_lea.hbm %s2, %s200
          %s202 = sshll.u32 %s194, 4
          %s203 = int_to_ptr.vmem [resolvable:$true] %s202
          %208 = dma.hbm_to_vmem [thread:$0]  %s201, 8192, %s203, %s191, 256, 256, 16
        $region28: #{tpu_custom_call.1} parent=19 // pred_fallthru
          _
      $region20: #{tpu_custom_call.1} parent=5 // pred_fallthru
        _
      %p209 = scmp.le.s32.totalorder 1, %s14
      %p210 = scmp.lt.s32.totalorder %s14, 3
      %p211 = pnand %p209, %p210
      %p212 = pneg %p211
      // Predicated region
      $region29: #{tpu_custom_call.1} parent=5 // pred_check
        _
      $region30: #{tpu_custom_call.1} parent=5 // pred_check_branch
        %214 = sbr.rel (%p211) target = $region32
      $region31: #{tpu_custom_call.1} parent=5 // pred_region
        %s215 = ssub.s32 %s14, 1
        // Predicated region
        $region33: #{tpu_custom_call.1} parent=31 // pred_check
          %p216 = pneg %p52
        $region34: #{tpu_custom_call.1} parent=31 // pred_check_branch
          %218 = sbr.rel (%p216) target = $region36
        $region35: #{tpu_custom_call.1} parent=31 // pred_region
          %219 = dma.done [#allocation4], 768
        $region36: #{tpu_custom_call.1} parent=31 // pred_fallthru
          _
        %s220 = sand.u32 %s19, 1
        %s221 = scalar_lea.sflag [#allocation7], %s220
        %s222 = sand.u32 %s65, 1
        %s223 = smul.addr %s222, 1024
        %s224 = scalar_lea.vmem [#allocation6], %s223
        // Predicated region
        $region37: #{tpu_custom_call.1} parent=31 // pred_check
          %p225 = pneg %p78
        $region38: #{tpu_custom_call.1} parent=31 // pred_check_branch
          %227 = sbr.rel (%p225) target = $region40
        $region39: #{tpu_custom_call.1} parent=31 // pred_region
          %228 = dma.done %s221, 16384
        $region40: #{tpu_custom_call.1} parent=31 // pred_fallthru
          _
        %s229 = sand.u32 %s19, 1
        %s230 = scalar_lea.sflag [#allocation7], %s229
        %s231 = sand.u32 %s91, 1
        %s232 = smul.addr %s231, 512
        %s233 = scalar_lea.vmem [#allocation8], %s232
        // Predicated region
        $region41: #{tpu_custom_call.1} parent=31 // pred_check
          %p234 = pneg %p104
        $region42: #{tpu_custom_call.1} parent=31 // pred_check_branch
          %236 = sbr.rel (%p234) target = $region44
        $region43: #{tpu_custom_call.1} parent=31 // pred_region
          %237 = dma.done %s230, 8192
        $region44: #{tpu_custom_call.1} parent=31 // pred_fallthru
          _
        %p238 = pneg %p52
        %p239 = pneg %p49
        %s240 = sand.u32 %s19, 1
        %s241 = scalar_lea.sflag [#allocation7], %s240
        %s242 = sand.u32 %s65, 1
        %s243 = smul.addr %s242, 1024
        %s244 = scalar_lea.vmem [#allocation6], %s243
        %p245 = pneg %p78
        %p246 = pneg %p75
        %s247 = sand.u32 %s19, 1
        %s248 = scalar_lea.sflag [#allocation7], %s247
        %s249 = sand.u32 %s91, 1
        %s250 = smul.addr %s249, 512
        %s251 = scalar_lea.vmem [#allocation8], %s250
        %p252 = pneg %p104
        %p253 = pneg %p101
        %p254 = pneg %p130
        %p255 = pneg %p127
        %s256 = smul.u32 3, %s23
        %s257 = smul.u32 4, %s24
        %s258 = smul.u32 32, %s24
        %s259 = smul.u32 3, %s23
        %v260 = vld [vmem:[#allocation3] sm:$0xff]
        %v261 = vld [vmem:[#allocation3 + $0x8] sm:$0xff]
        %v262 = vld [vmem:[#allocation3 + $0x10] sm:$0xff]
        %v263 = vld [vmem:[#allocation3 + $0x18] sm:$0xff]
        %v264 = vld [vmem:[#allocation3 + $0x20] sm:$0xff]
        %v265 = vld [vmem:[#allocation3 + $0x28] sm:$0xff]
        %v266 = vld [vmem:[%s224] sm:$0xff]
        %v267 = vld [vmem:[%s224 + $0x8] sm:$0xff]
        %v268 = vld [vmem:[%s224 + $0x10] sm:$0xff]
        %v269 = vld [vmem:[%s224 + $0x18] sm:$0xff]
        %v270 = vld [vmem:[%s224 + $0x20] sm:$0xff]
        %v271 = vld [vmem:[%s224 + $0x28] sm:$0xff]
        %v272 = vld [vmem:[%s224 + $0x30] sm:$0xff]
        %v273 = vld [vmem:[%s224 + $0x38] sm:$0xff]
        %v274 = vld [vmem:[%s224 + $0x40] sm:$0xff]
        %v275 = vld [vmem:[%s224 + $0x48] sm:$0xff]
        %v276 = vld [vmem:[%s224 + $0x50] sm:$0xff]
        %v277 = vld [vmem:[%s224 + $0x58] sm:$0xff]
        %v278 = vld [vmem:[%s224 + $0x60] sm:$0xff]
        %v279 = vld [vmem:[%s224 + $0x68] sm:$0xff]
        %v280 = vld [vmem:[%s224 + $0x70] sm:$0xff]
        %v281 = vld [vmem:[%s224 + $0x78] sm:$0xff]
        %v282 = vld [vmem:[%s224 + $0x80] sm:$0xff]
        %v283 = vld [vmem:[%s224 + $0x88] sm:$0xff]
        %v284 = vld [vmem:[%s224 + $0x90] sm:$0xff]
        %v285 = vld [vmem:[%s224 + $0x98] sm:$0xff]
        %v286 = vld [vmem:[%s224 + $0xa0] sm:$0xff]
        %v287 = vld [vmem:[%s224 + $0xa8] sm:$0xff]
        %v288 = vld [vmem:[%s224 + $0xb0] sm:$0xff]
        %v289 = vld [vmem:[%s224 + $0xb8] sm:$0xff]
        %v290 = vld [vmem:[%s224 + $0xc0] sm:$0xff]
        %v291 = vld [vmem:[%s224 + $0xc8] sm:$0xff]
        %v292 = vld [vmem:[%s224 + $0xd0] sm:$0xff]
        %v293 = vld [vmem:[%s224 + $0xd8] sm:$0xff]
        %v294 = vld [vmem:[%s224 + $0xe0] sm:$0xff]
        %v295 = vld [vmem:[%s224 + $0xe8] sm:$0xff]
        %v296 = vld [vmem:[%s224 + $0xf0] sm:$0xff]
        %v297 = vld [vmem:[%s224 + $0xf8] sm:$0xff]
        %v298 = vld [vmem:[%s224 + $0x100] sm:$0xff]
        %v299 = vld [vmem:[%s224 + $0x108] sm:$0xff]
        %v300 = vld [vmem:[%s224 + $0x110] sm:$0xff]
        %v301 = vld [vmem:[%s224 + $0x118] sm:$0xff]
        %v302 = vld [vmem:[%s224 + $0x120] sm:$0xff]
        %v303 = vld [vmem:[%s224 + $0x128] sm:$0xff]
        %v304 = vld [vmem:[%s224 + $0x130] sm:$0xff]
        %v305 = vld [vmem:[%s224 + $0x138] sm:$0xff]
        %v306 = vld [vmem:[%s224 + $0x140] sm:$0xff]
        %v307 = vld [vmem:[%s224 + $0x148] sm:$0xff]
        %v308 = vld [vmem:[%s224 + $0x150] sm:$0xff]
        %v309 = vld [vmem:[%s224 + $0x158] sm:$0xff]
        %v310 = vld [vmem:[%s224 + $0x160] sm:$0xff]
        %v311 = vld [vmem:[%s224 + $0x168] sm:$0xff]
        %v312 = vld [vmem:[%s224 + $0x170] sm:$0xff]
        %v313 = vld [vmem:[%s224 + $0x178] sm:$0xff]
        %v314 = vld [vmem:[%s224 + $0x180] sm:$0xff]
        %v315 = vld [vmem:[%s224 + $0x188] sm:$0xff]
        %v316 = vld [vmem:[%s224 + $0x190] sm:$0xff]
        %v317 = vld [vmem:[%s224 + $0x198] sm:$0xff]
        %v318 = vld [vmem:[%s224 + $0x1a0] sm:$0xff]
        %v319 = vld [vmem:[%s224 + $0x1a8] sm:$0xff]
        %v320 = vld [vmem:[%s224 + $0x1b0] sm:$0xff]
        %v321 = vld [vmem:[%s224 + $0x1b8] sm:$0xff]
        %v322 = vld [vmem:[%s224 + $0x1c0] sm:$0xff]
        %v323 = vld [vmem:[%s224 + $0x1c8] sm:$0xff]
        %v324 = vld [vmem:[%s224 + $0x1d0] sm:$0xff]
        %v325 = vld [vmem:[%s224 + $0x1d8] sm:$0xff]
        %v326 = vld [vmem:[%s224 + $0x1e0] sm:$0xff]
        %v327 = vld [vmem:[%s224 + $0x1e8] sm:$0xff]
        %v328 = vld [vmem:[%s224 + $0x1f0] sm:$0xff]
        %v329 = vld [vmem:[%s224 + $0x1f8] sm:$0xff]
        %v330 = vld [vmem:[%s224 + $0x200] sm:$0xff]
        %v331 = vld [vmem:[%s224 + $0x208] sm:$0xff]
        %v332 = vld [vmem:[%s224 + $0x210] sm:$0xff]
        %v333 = vld [vmem:[%s224 + $0x218] sm:$0xff]
        %v334 = vld [vmem:[%s224 + $0x220] sm:$0xff]
        %v335 = vld [vmem:[%s224 + $0x228] sm:$0xff]
        %v336 = vld [vmem:[%s224 + $0x230] sm:$0xff]
        %v337 = vld [vmem:[%s224 + $0x238] sm:$0xff]
        %v338 = vld [vmem:[%s224 + $0x240] sm:$0xff]
        %v339 = vld [vmem:[%s224 + $0x248] sm:$0xff]
        %v340 = vld [vmem:[%s224 + $0x250] sm:$0xff]
        %v341 = vld [vmem:[%s224 + $0x258] sm:$0xff]
        %v342 = vld [vmem:[%s224 + $0x260] sm:$0xff]
        %v343 = vld [vmem:[%s224 + $0x268] sm:$0xff]
        %v344 = vld [vmem:[%s224 + $0x270] sm:$0xff]
        %v345 = vld [vmem:[%s224 + $0x278] sm:$0xff]
        %v346 = vld [vmem:[%s224 + $0x280] sm:$0xff]
        %v347 = vld [vmem:[%s224 + $0x288] sm:$0xff]
        %v348 = vld [vmem:[%s224 + $0x290] sm:$0xff]
        %v349 = vld [vmem:[%s224 + $0x298] sm:$0xff]
        %v350 = vld [vmem:[%s224 + $0x2a0] sm:$0xff]
        %v351 = vld [vmem:[%s224 + $0x2a8] sm:$0xff]
        %v352 = vld [vmem:[%s224 + $0x2b0] sm:$0xff]
        %v353 = vld [vmem:[%s224 + $0x2b8] sm:$0xff]
        %v354 = vld [vmem:[%s224 + $0x2c0] sm:$0xff]
        %v355 = vld [vmem:[%s224 + $0x2c8] sm:$0xff]
        %v356 = vld [vmem:[%s224 + $0x2d0] sm:$0xff]
        %v357 = vld [vmem:[%s224 + $0x2d8] sm:$0xff]
        %v358 = vld [vmem:[%s224 + $0x2e0] sm:$0xff]
        %v359 = vld [vmem:[%s224 + $0x2e8] sm:$0xff]
        %v360 = vld [vmem:[%s224 + $0x2f0] sm:$0xff]
        %v361 = vld [vmem:[%s224 + $0x2f8] sm:$0xff]
        %v362 = vld [vmem:[%s224 + $0x300] sm:$0xff]
        %v363 = vld [vmem:[%s224 + $0x308] sm:$0xff]
        %v364 = vld [vmem:[%s224 + $0x310] sm:$0xff]
        %v365 = vld [vmem:[%s224 + $0x318] sm:$0xff]
        %v366 = vld [vmem:[%s224 + $0x320] sm:$0xff]
        %v367 = vld [vmem:[%s224 + $0x328] sm:$0xff]
        %v368 = vld [vmem:[%s224 + $0x330] sm:$0xff]
        %v369 = vld [vmem:[%s224 + $0x338] sm:$0xff]
        %v370 = vld [vmem:[%s224 + $0x340] sm:$0xff]
        %v371 = vld [vmem:[%s224 + $0x348] sm:$0xff]
        %v372 = vld [vmem:[%s224 + $0x350] sm:$0xff]
        %v373 = vld [vmem:[%s224 + $0x358] sm:$0xff]
        %v374 = vld [vmem:[%s224 + $0x360] sm:$0xff]
        %v375 = vld [vmem:[%s224 + $0x368] sm:$0xff]
        %v376 = vld [vmem:[%s224 + $0x370] sm:$0xff]
        %v377 = vld [vmem:[%s224 + $0x378] sm:$0xff]
        %v378 = vld [vmem:[%s224 + $0x380] sm:$0xff]
        %v379 = vld [vmem:[%s224 + $0x388] sm:$0xff]
        %v380 = vld [vmem:[%s224 + $0x390] sm:$0xff]
        %v381 = vld [vmem:[%s224 + $0x398] sm:$0xff]
        %v382 = vld [vmem:[%s224 + $0x3a0] sm:$0xff]
        %v383 = vld [vmem:[%s224 + $0x3a8] sm:$0xff]
        %v384 = vld [vmem:[%s224 + $0x3b0] sm:$0xff]
        %v385 = vld [vmem:[%s224 + $0x3b8] sm:$0xff]
        %v386 = vld [vmem:[%s224 + $0x3c0] sm:$0xff]
        %v387 = vld [vmem:[%s224 + $0x3c8] sm:$0xff]
        %v388 = vld [vmem:[%s224 + $0x3d0] sm:$0xff]
        %v389 = vld [vmem:[%s224 + $0x3d8] sm:$0xff]
        %v390 = vld [vmem:[%s224 + $0x3e0] sm:$0xff]
        %v391 = vld [vmem:[%s224 + $0x3e8] sm:$0xff]
        %v392 = vld [vmem:[%s224 + $0x3f0] sm:$0xff]
        %v393 = vld [vmem:[%s224 + $0x3f8] sm:$0xff]
        %394 = vmatprep.subr.mxu0 %v267
        %395 = vmatpush1.msra.mxu0 %v266
        %396 = vmatprep.subr.mxu0 %v271
        %397 = vmatpush1.msra.mxu0 %v270
        %398 = vmatprep.subr.mxu0 %v275
        %399 = vmatpush1.msra.mxu0 %v274
        %400 = vmatprep.subr.mxu0 %v279
        %401 = vmatpush1.msra.mxu0 %v278
        %402 = vmatprep.subr.mxu0 %v283
        %403 = vmatpush1.msra.mxu0 %v282
        %404 = vmatprep.subr.mxu0 %v287
        %405 = vmatpush1.msra.mxu0 %v286
        %406 = vmatprep.subr.mxu0 %v291
        %407 = vmatpush1.msra.mxu0 %v290
        %408 = vmatprep.subr.mxu0 %v295
        %409 = vmatpush1.msra.mxu0 %v294
        %410 = vmatprep.subr.mxu0 %v299
        %411 = vmatpush1.msra.mxu0 %v298
        %412 = vmatprep.subr.mxu0 %v303
        %413 = vmatpush1.msra.mxu0 %v302
        %414 = vmatprep.subr.mxu0 %v307
        %415 = vmatpush1.msra.mxu0 %v306
        %416 = vmatprep.subr.mxu0 %v311
        %417 = vmatpush1.msra.mxu0 %v310
        %418 = vmatprep.subr.mxu0 %v315
        %419 = vmatpush1.msra.mxu0 %v314
        %420 = vmatprep.subr.mxu0 %v319
        %421 = vmatpush1.msra.mxu0 %v318
        %422 = vmatprep.subr.mxu0 %v323
        %423 = vmatpush1.msra.mxu0 %v322
        %424 = vmatprep.subr.mxu0 %v327
        %425 = vmatpush1.msra.mxu0 %v326
        %426 = vmatprep.subr.mxu0 %v331
        %427 = vmatpush1.msra.mxu0 %v330
        %428 = vmatprep.subr.mxu0 %v335
        %429 = vmatpush1.msra.mxu0 %v334
        %430 = vmatprep.subr.mxu0 %v339
        %431 = vmatpush1.msra.mxu0 %v338
        %432 = vmatprep.subr.mxu0 %v343
        %433 = vmatpush1.msra.mxu0 %v342
        %434 = vmatprep.subr.mxu0 %v347
        %435 = vmatpush1.msra.mxu0 %v346
        %436 = vmatprep.subr.mxu0 %v351
        %437 = vmatpush1.msra.mxu0 %v350
        %438 = vmatprep.subr.mxu0 %v355
        %439 = vmatpush1.msra.mxu0 %v354
        %440 = vmatprep.subr.mxu0 %v359
        %441 = vmatpush1.msra.mxu0 %v358
        %442 = vmatprep.subr.mxu0 %v363
        %443 = vmatpush1.msra.mxu0 %v362
        %444 = vmatprep.subr.mxu0 %v367
        %445 = vmatpush1.msra.mxu0 %v366
        %446 = vmatprep.subr.mxu0 %v371
        %447 = vmatpush1.msra.mxu0 %v370
        %448 = vmatprep.subr.mxu0 %v375
        %449 = vmatpush1.msra.mxu0 %v374
        %450 = vmatprep.subr.mxu0 %v379
        %451 = vmatpush1.msra.mxu0 %v378
        %452 = vmatprep.subr.mxu0 %v383
        %453 = vmatpush1.msra.mxu0 %v382
        %454 = vmatprep.subr.mxu0 %v387
        %455 = vmatpush1.msra.mxu0 %v386
        %456 = vmatprep.subr.mxu0 %v391
        %457 = vmatpush1.msra.mxu0 %v390
        %458 = vmatprep.mubr.f32.mxu0 %v261
        %459 = vmatmul.mubr.f32.gmra.mrb[0].mxu0 %v260
        %v460 = vpop.f32.mrb[0].mxu0
        %v461 = vadd.f32 0.0, %v460
        %v462 = vpop.f32.mrb[0].mxu0
        %v463 = vadd.f32 0.0, %v462
        %464 = vmatprep.mubr.f32.mxu0 %v263
        %465 = vmatmul.mubr.f32.gmra.mrb[0].mxu0 %v262
        %v466 = vpop.f32.mrb[0].mxu0
        %v467 = vadd.f32 0.0, %v466
        %v468 = vpop.f32.mrb[0].mxu0
        %v469 = vadd.f32 0.0, %v468
        %470 = vmatprep.mubr.f32.mxu0 %v265
        %471 = vmatmul.mubr.f32.gmra.mrb[0].mxu0 %v264
        %v472 = vpop.f32.mrb[0].mxu0
        %v473 = vadd.f32 0.0, %v472
        %v474 = vpop.f32.mrb[0].mxu0
        %v475 = vadd.f32 0.0, %v474
        %476 = vdwg.mxu0
        %477 = vmatprep.subr.mxu0 %v269
        %478 = vmatpush1.msra.mxu0 %v268
        %479 = vmatprep.subr.mxu0 %v273
        %480 = vmatpush1.msra.mxu0 %v272
        %481 = vmatprep.subr.mxu0 %v277
        %482 = vmatpush1.msra.mxu0 %v276
        %483 = vmatprep.subr.mxu0 %v281
        %484 = vmatpush1.msra.mxu0 %v280
        %485 = vmatprep.subr.mxu0 %v285
        %486 = vmatpush1.msra.mxu0 %v284
        %487 = vmatprep.subr.mxu0 %v289
        %488 = vmatpush1.msra.mxu0 %v288
        %489 = vmatprep.subr.mxu0 %v293
        %490 = vmatpush1.msra.mxu0 %v292
        %491 = vmatprep.subr.mxu0 %v297
        %492 = vmatpush1.msra.mxu0 %v296
        %493 = vmatprep.subr.mxu0 %v301
        %494 = vmatpush1.msra.mxu0 %v300
        %495 = vmatprep.subr.mxu0 %v305
        %496 = vmatpush1.msra.mxu0 %v304
        %497 = vmatprep.subr.mxu0 %v309
        %498 = vmatpush1.msra.mxu0 %v308
        %499 = vmatprep.subr.mxu0 %v313
        %500 = vmatpush1.msra.mxu0 %v312
        %501 = vmatprep.subr.mxu0 %v317
        %502 = vmatpush1.msra.mxu0 %v316
        %503 = vmatprep.subr.mxu0 %v321
        %504 = vmatpush1.msra.mxu0 %v320
        %505 = vmatprep.subr.mxu0 %v325
        %506 = vmatpush1.msra.mxu0 %v324
        %507 = vmatprep.subr.mxu0 %v329
        %508 = vmatpush1.msra.mxu0 %v328
        %509 = vmatprep.subr.mxu0 %v333
        %510 = vmatpush1.msra.mxu0 %v332
        %511 = vmatprep.subr.mxu0 %v337
        %512 = vmatpush1.msra.mxu0 %v336
        %513 = vmatprep.subr.mxu0 %v341
        %514 = vmatpush1.msra.mxu0 %v340
        %515 = vmatprep.subr.mxu0 %v345
        %516 = vmatpush1.msra.mxu0 %v344
        %517 = vmatprep.subr.mxu0 %v349
        %518 = vmatpush1.msra.mxu0 %v348
        %519 = vmatprep.subr.mxu0 %v353
        %520 = vmatpush1.msra.mxu0 %v352
        %521 = vmatprep.subr.mxu0 %v357
        %522 = vmatpush1.msra.mxu0 %v356
        %523 = vmatprep.subr.mxu0 %v361
        %524 = vmatpush1.msra.mxu0 %v360
        %525 = vmatprep.subr.mxu0 %v365
        %526 = vmatpush1.msra.mxu0 %v364
        %527 = vmatprep.subr.mxu0 %v369
        %528 = vmatpush1.msra.mxu0 %v368
        %529 = vmatprep.subr.mxu0 %v373
        %530 = vmatpush1.msra.mxu0 %v372
        %531 = vmatprep.subr.mxu0 %v377
        %532 = vmatpush1.msra.mxu0 %v376
        %533 = vmatprep.subr.mxu0 %v381
        %534 = vmatpush1.msra.mxu0 %v380
        %535 = vmatprep.subr.mxu0 %v385
        %536 = vmatpush1.msra.mxu0 %v384
        %537 = vmatprep.subr.mxu0 %v389
        %538 = vmatpush1.msra.mxu0 %v388
        %539 = vmatprep.subr.mxu0 %v393
        %540 = vmatpush1.msra.mxu0 %v392
        %541 = vmatprep.mubr.f32.mxu0 %v261
        %542 = vmatmul.mubr.f32.gmra.mrb[0].mxu0 %v260
        %v543 = vpop.f32.mrb[0].mxu0
        %v544 = vadd.f32 0.0, %v543
        %v545 = vpop.f32.mrb[0].mxu0
        %v546 = vadd.f32 0.0, %v545
        %547 = vmatprep.mubr.f32.mxu0 %v263
        %548 = vmatmul.mubr.f32.gmra.mrb[0].mxu0 %v262
        %v549 = vpop.f32.mrb[0].mxu0
        %v550 = vadd.f32 0.0, %v549
        %v551 = vpop.f32.mrb[0].mxu0
        %v552 = vadd.f32 0.0, %v551
        %553 = vmatprep.mubr.f32.mxu0 %v265
        %554 = vmatmul.mubr.f32.gmra.mrb[0].mxu0 %v264
        %v555 = vpop.f32.mrb[0].mxu0
        %v556 = vadd.f32 0.0, %v555
        %v557 = vpop.f32.mrb[0].mxu0
        %v558 = vadd.f32 0.0, %v557
        %559 = vdwg.mxu0
        %v560 = vxor.u32 %v461, 2147483648
        %v561 = vxor.u32 %v463, 2147483648
        %v562 = vxor.u32 %v467, 2147483648
        %v563 = vxor.u32 %v469, 2147483648
        %v564 = vxor.u32 %v473, 2147483648
        %v565 = vxor.u32 %v475, 2147483648
        %v566 = vmul.f32 %v560, 1.442695
        %v567 = vpow.pop %v566
        %v568 = vmul.f32 %v561, 1.442695
        %v569 = vpow.pop %v568
        %v570 = vmul.f32 %v562, 1.442695
        %v571 = vpow.pop %v570
        %v572 = vmul.f32 %v563, 1.442695
        %v573 = vpow.pop %v572
        %v574 = vmul.f32 %v564, 1.442695
        %v575 = vpow.pop %v574
        %v576 = vmul.f32 %v565, 1.442695
        %v577 = vpow.pop %v576
        %v578 = vadd.f32 %v567, 1.0
        %v579 = vadd.f32 %v569, 1.0
        %v580 = vadd.f32 %v571, 1.0
        %v581 = vadd.f32 %v573, 1.0
        %v582 = vadd.f32 %v575, 1.0
        %v583 = vadd.f32 %v577, 1.0
        %v584 = vrcp.pop %v578
        %v585 = vmul.f32 1.0, %v584
        %v586 = vrcp.pop %v579
        %v587 = vmul.f32 1.0, %v586
        %v588 = vrcp.pop %v580
        %v589 = vmul.f32 1.0, %v588
        %v590 = vrcp.pop %v581
        %v591 = vmul.f32 1.0, %v590
        %v592 = vrcp.pop %v582
        %v593 = vmul.f32 1.0, %v592
        %v594 = vrcp.pop %v583
        %v595 = vmul.f32 1.0, %v594
        %v596 = vmul.f32 %v461, %v585
        %v597 = vmul.f32 %v463, %v587
        %v598 = vmul.f32 %v467, %v589
        %v599 = vmul.f32 %v469, %v591
        %v600 = vmul.f32 %v473, %v593
        %v601 = vmul.f32 %v475, %v595
        %v602 = vmul.f32 %v596, %v544
        %v603 = vmul.f32 %v597, %v546
        %v604 = vmul.f32 %v598, %v550
        %v605 = vmul.f32 %v599, %v552
        %v606 = vmul.f32 %v600, %v556
        %v607 = vmul.f32 %v601, %v558
        %v608 = vld [vmem:[%s233] sm:$0xff]
        %v609 = vld [vmem:[%s233 + $0x8] sm:$0xff]
        %v610 = vld [vmem:[%s233 + $0x10] sm:$0xff]
        %v611 = vld [vmem:[%s233 + $0x18] sm:$0xff]
        %v612 = vld [vmem:[%s233 + $0x20] sm:$0xff]
        %v613 = vld [vmem:[%s233 + $0x28] sm:$0xff]
        %v614 = vld [vmem:[%s233 + $0x30] sm:$0xff]
        %v615 = vld [vmem:[%s233 + $0x38] sm:$0xff]
        %v616 = vld [vmem:[%s233 + $0x40] sm:$0xff]
        %v617 = vld [vmem:[%s233 + $0x48] sm:$0xff]
        %v618 = vld [vmem:[%s233 + $0x50] sm:$0xff]
        %v619 = vld [vmem:[%s233 + $0x58] sm:$0xff]
        %v620 = vld [vmem:[%s233 + $0x60] sm:$0xff]
        %v621 = vld [vmem:[%s233 + $0x68] sm:$0xff]
        %v622 = vld [vmem:[%s233 + $0x70] sm:$0xff]
        %v623 = vld [vmem:[%s233 + $0x78] sm:$0xff]
        %v624 = vld [vmem:[%s233 + $0x80] sm:$0xff]
        %v625 = vld [vmem:[%s233 + $0x88] sm:$0xff]
        %v626 = vld [vmem:[%s233 + $0x90] sm:$0xff]
        %v627 = vld [vmem:[%s233 + $0x98] sm:$0xff]
        %v628 = vld [vmem:[%s233 + $0xa0] sm:$0xff]
        %v629 = vld [vmem:[%s233 + $0xa8] sm:$0xff]
        %v630 = vld [vmem:[%s233 + $0xb0] sm:$0xff]
        %v631 = vld [vmem:[%s233 + $0xb8] sm:$0xff]
        %v632 = vld [vmem:[%s233 + $0xc0] sm:$0xff]
        %v633 = vld [vmem:[%s233 + $0xc8] sm:$0xff]
        %v634 = vld [vmem:[%s233 + $0xd0] sm:$0xff]
        %v635 = vld [vmem:[%s233 + $0xd8] sm:$0xff]
        %v636 = vld [vmem:[%s233 + $0xe0] sm:$0xff]
        %v637 = vld [vmem:[%s233 + $0xe8] sm:$0xff]
        %v638 = vld [vmem:[%s233 + $0xf0] sm:$0xff]
        %v639 = vld [vmem:[%s233 + $0xf8] sm:$0xff]
        %v640 = vld [vmem:[%s233 + $0x100] sm:$0xff]
        %v641 = vld [vmem:[%s233 + $0x108] sm:$0xff]
        %v642 = vld [vmem:[%s233 + $0x110] sm:$0xff]
        %v643 = vld [vmem:[%s233 + $0x118] sm:$0xff]
        %v644 = vld [vmem:[%s233 + $0x120] sm:$0xff]
        %v645 = vld [vmem:[%s233 + $0x128] sm:$0xff]
        %v646 = vld [vmem:[%s233 + $0x130] sm:$0xff]
        %v647 = vld [vmem:[%s233 + $0x138] sm:$0xff]
        %v648 = vld [vmem:[%s233 + $0x140] sm:$0xff]
        %v649 = vld [vmem:[%s233 + $0x148] sm:$0xff]
        %v650 = vld [vmem:[%s233 + $0x150] sm:$0xff]
        %v651 = vld [vmem:[%s233 + $0x158] sm:$0xff]
        %v652 = vld [vmem:[%s233 + $0x160] sm:$0xff]
        %v653 = vld [vmem:[%s233 + $0x168] sm:$0xff]
        %v654 = vld [vmem:[%s233 + $0x170] sm:$0xff]
        %v655 = vld [vmem:[%s233 + $0x178] sm:$0xff]
        %v656 = vld [vmem:[%s233 + $0x180] sm:$0xff]
        %v657 = vld [vmem:[%s233 + $0x188] sm:$0xff]
        %v658 = vld [vmem:[%s233 + $0x190] sm:$0xff]
        %v659 = vld [vmem:[%s233 + $0x198] sm:$0xff]
        %v660 = vld [vmem:[%s233 + $0x1a0] sm:$0xff]
        %v661 = vld [vmem:[%s233 + $0x1a8] sm:$0xff]
        %v662 = vld [vmem:[%s233 + $0x1b0] sm:$0xff]
        %v663 = vld [vmem:[%s233 + $0x1b8] sm:$0xff]
        %v664 = vld [vmem:[%s233 + $0x1c0] sm:$0xff]
        %v665 = vld [vmem:[%s233 + $0x1c8] sm:$0xff]
        %v666 = vld [vmem:[%s233 + $0x1d0] sm:$0xff]
        %v667 = vld [vmem:[%s233 + $0x1d8] sm:$0xff]
        %v668 = vld [vmem:[%s233 + $0x1e0] sm:$0xff]
        %v669 = vld [vmem:[%s233 + $0x1e8] sm:$0xff]
        %v670 = vld [vmem:[%s233 + $0x1f0] sm:$0xff]
        %v671 = vld [vmem:[%s233 + $0x1f8] sm:$0xff]
        %672 = vmatprep.subr.mxu0 %v609
        %673 = vmatpush1.msra.mxu0 %v608
        %674 = vmatprep.subr.mxu0 %v611
        %675 = vmatpush1.msra.mxu0 %v610
        %676 = vmatprep.subr.mxu0 %v613
        %677 = vmatpush1.msra.mxu0 %v612
        %678 = vmatprep.subr.mxu0 %v615
        %679 = vmatpush1.msra.mxu0 %v614
        %680 = vmatprep.subr.mxu0 %v617
        %681 = vmatpush1.msra.mxu0 %v616
        %682 = vmatprep.subr.mxu0 %v619
        %683 = vmatpush1.msra.mxu0 %v618
        %684 = vmatprep.subr.mxu0 %v621
        %685 = vmatpush1.msra.mxu0 %v620
        %686 = vmatprep.subr.mxu0 %v623
        %687 = vmatpush1.msra.mxu0 %v622
        %688 = vmatprep.subr.mxu0 %v625
        %689 = vmatpush1.msra.mxu0 %v624
        %690 = vmatprep.subr.mxu0 %v627
        %691 = vmatpush1.msra.mxu0 %v626
        %692 = vmatprep.subr.mxu0 %v629
        %693 = vmatpush1.msra.mxu0 %v628
        %694 = vmatprep.subr.mxu0 %v631
        %695 = vmatpush1.msra.mxu0 %v630
        %696 = vmatprep.subr.mxu0 %v633
        %697 = vmatpush1.msra.mxu0 %v632
        %698 = vmatprep.subr.mxu0 %v635
        %699 = vmatpush1.msra.mxu0 %v634
        %700 = vmatprep.subr.mxu0 %v637
        %701 = vmatpush1.msra.mxu0 %v636
        %702 = vmatprep.subr.mxu0 %v639
        %703 = vmatpush1.msra.mxu0 %v638
        %704 = vmatprep.subr.mxu0 %v641
        %705 = vmatpush1.msra.mxu0 %v640
        %706 = vmatprep.subr.mxu0 %v643
        %707 = vmatpush1.msra.mxu0 %v642
        %708 = vmatprep.subr.mxu0 %v645
        %709 = vmatpush1.msra.mxu0 %v644
        %710 = vmatprep.subr.mxu0 %v647
        %711 = vmatpush1.msra.mxu0 %v646
        %712 = vmatprep.subr.mxu0 %v649
        %713 = vmatpush1.msra.mxu0 %v648
        %714 = vmatprep.subr.mxu0 %v651
        %715 = vmatpush1.msra.mxu0 %v650
        %716 = vmatprep.subr.mxu0 %v653
        %717 = vmatpush1.msra.mxu0 %v652
        %718 = vmatprep.subr.mxu0 %v655
        %719 = vmatpush1.msra.mxu0 %v654
        %720 = vmatprep.subr.mxu0 %v657
        %721 = vmatpush1.msra.mxu0 %v656
        %722 = vmatprep.subr.mxu0 %v659
        %723 = vmatpush1.msra.mxu0 %v658
        %724 = vmatprep.subr.mxu0 %v661
        %725 = vmatpush1.msra.mxu0 %v660
        %726 = vmatprep.subr.mxu0 %v663
        %727 = vmatpush1.msra.mxu0 %v662
        %728 = vmatprep.subr.mxu0 %v665
        %729 = vmatpush1.msra.mxu0 %v664
        %730 = vmatprep.subr.mxu0 %v667
        %731 = vmatpush1.msra.mxu0 %v666
        %732 = vmatprep.subr.mxu0 %v669
        %733 = vmatpush1.msra.mxu0 %v668
        %734 = vmatprep.subr.mxu0 %v671
        %735 = vmatpush1.msra.mxu0 %v670
        %736 = vmatprep.mubr.f32.mxu0 %v603
        %737 = vmatmul.mubr.f32.gmra.mrb[0].mxu0 %v602
        %v738 = vpop.f32.mrb[0].mxu0
        %v739 = vadd.f32 0.0, %v738
        %v740 = vpop.f32.mrb[0].mxu0
        %v741 = vadd.f32 0.0, %v740
        %742 = vmatprep.mubr.f32.mxu0 %v605
        %743 = vmatmul.mubr.f32.gmra.mrb[0].mxu0 %v604
        %v744 = vpop.f32.mrb[0].mxu0
        %v745 = vadd.f32 0.0, %v744
        %v746 = vpop.f32.mrb[0].mxu0
        %v747 = vadd.f32 0.0, %v746
        %748 = vmatprep.mubr.f32.mxu0 %v607
        %749 = vmatmul.mubr.f32.gmra.mrb[0].mxu0 %v606
        %v750 = vpop.f32.mrb[0].mxu0
        %v751 = vadd.f32 0.0, %v750
        %v752 = vpop.f32.mrb[0].mxu0
        %v753 = vadd.f32 0.0, %v752
        %754 = vdwg.mxu0
        %p755 = scmp.eq.s32.totalorder %s24, 0
        // Predicated region
        $region45: #{tpu_custom_call.1} parent=31 // pred_check
          %p756 = pneg %p755
        $region46: #{tpu_custom_call.1} parent=31 // pred_check_branch
          %758 = sbr.rel (%p756) target = $region48
        $region47: #{tpu_custom_call.1} parent=31 // pred_region
          %759 = vst [vmem:[#allocation2] sm:$0xff] %v739
          %760 = vst [vmem:[#allocation2 + $0x8] sm:$0xff] %v741
          %761 = vst [vmem:[#allocation2 + $0x10] sm:$0xff] %v745
          %762 = vst [vmem:[#allocation2 + $0x18] sm:$0xff] %v747
          %763 = vst [vmem:[#allocation2 + $0x20] sm:$0xff] %v751
          %764 = vst [vmem:[#allocation2 + $0x28] sm:$0xff] %v753
        $region48: #{tpu_custom_call.1} parent=31 // pred_fallthru
          _
        %p765 = scmp.gt.s32.totalorder %s24, 0
        // Predicated region
        $region49: #{tpu_custom_call.1} parent=31 // pred_check
          %p766 = pneg %p765
        $region50: #{tpu_custom_call.1} parent=31 // pred_check_branch
          %768 = sbr.rel (%p766) target = $region52
        $region51: #{tpu_custom_call.1} parent=31 // pred_region
          %v769 = vld [vmem:[#allocation2] sm:$0xff]
          %v770 = vld [vmem:[#allocation2 + $0x8] sm:$0xff]
          %v771 = vld [vmem:[#allocation2 + $0x10] sm:$0xff]
          %v772 = vld [vmem:[#allocation2 + $0x18] sm:$0xff]
          %v773 = vld [vmem:[#allocation2 + $0x20] sm:$0xff]
          %v774 = vld [vmem:[#allocation2 + $0x28] sm:$0xff]
          %v775 = vadd.f32 %v769, %v739
          %v776 = vadd.f32 %v770, %v741
          %v777 = vadd.f32 %v771, %v745
          %v778 = vadd.f32 %v772, %v747
          %v779 = vadd.f32 %v773, %v751
          %v780 = vadd.f32 %v774, %v753
          %781 = vst [vmem:[#allocation2] sm:$0xff] %v775
          %782 = vst [vmem:[#allocation2 + $0x8] sm:$0xff] %v776
          %783 = vst [vmem:[#allocation2 + $0x10] sm:$0xff] %v777
          %784 = vst [vmem:[#allocation2 + $0x18] sm:$0xff] %v778
          %785 = vst [vmem:[#allocation2 + $0x20] sm:$0xff] %v779
          %786 = vst [vmem:[#allocation2 + $0x28] sm:$0xff] %v780
        $region52: #{tpu_custom_call.1} parent=31 // pred_fallthru
          _
        %p787 = scmp.eq.s32.totalorder %s24, 1
        // Predicated region
        $region53: #{tpu_custom_call.1} parent=31 // pred_check
          %p788 = pneg %p787
        $region54: #{tpu_custom_call.1} parent=31 // pred_check_branch
          %790 = sbr.rel (%p788) target = $region56
        $region55: #{tpu_custom_call.1} parent=31 // pred_region
          %v791 = vld [vmem:[#allocation2] sm:$0xff]
          %v792 = vld [vmem:[#allocation2 + $0x8] sm:$0xff]
          %v793 = vld [vmem:[#allocation2 + $0x10] sm:$0xff]
          %v794 = vld [vmem:[#allocation2 + $0x18] sm:$0xff]
          %v795 = vld [vmem:[#allocation2 + $0x20] sm:$0xff]
          %v796 = vld [vmem:[#allocation2 + $0x28] sm:$0xff]
          %797 = vst [vmem:[#allocation9] sm:$0xff] %v791
          %798 = vst [vmem:[#allocation9 + $0x8] sm:$0xff] %v792
          %799 = vst [vmem:[#allocation9 + $0x10] sm:$0xff] %v793
          %800 = vst [vmem:[#allocation9 + $0x18] sm:$0xff] %v794
          %801 = vst [vmem:[#allocation9 + $0x20] sm:$0xff] %v795
          %802 = vst [vmem:[#allocation9 + $0x28] sm:$0xff] %v796
        $region56: #{tpu_custom_call.1} parent=31 // pred_fallthru
          _
        // Predicated region
        $region57: #{tpu_custom_call.1} parent=31 // pred_check
          %p803 = pneg %p127
        $region58: #{tpu_custom_call.1} parent=31 // pred_check_branch
          %805 = sbr.rel (%p803) target = $region60
        $region59: #{tpu_custom_call.1} parent=31 // pred_region
          %s806 = smul.u32 3, %s23
          %s808 = ssub.s32 768, 768
          %809 = vsyncadd [#allocation5], %s808
          %s810 = smul.addr %s806, 2
          %s811 = smul.addr %s810, 128
          %s812 = scalar_lea.hbm %s3, %s811
          %s813 = sshll.u32 [#allocation9], 4
          %s814 = int_to_ptr.vmem [resolvable:$true] %s813
          %819 = dma.vmem_to_hbm [thread:$0]  %s814, 768, %s812, [#allocation5], 256, 256, 16
        $region60: #{tpu_custom_call.1} parent=31 // pred_fallthru
          _
        // Predicated region
        $region61: #{tpu_custom_call.1} parent=31 // pred_check
          %p820 = pneg %p127
        $region62: #{tpu_custom_call.1} parent=31 // pred_check_branch
          %822 = sbr.rel (%p820) target = $region64
        $region63: #{tpu_custom_call.1} parent=31 // pred_region
          %823 = dma.done [#allocation5], 768
        $region64: #{tpu_custom_call.1} parent=31 // pred_fallthru
          _
      $region32: #{tpu_custom_call.1} parent=5 // pred_fallthru
        _
      %p824 = scmp.le.s32.totalorder 2, %s14
      // Predicated region
      $region65: #{tpu_custom_call.1} parent=5 // pred_check
        %p825 = pneg %p824
      $region66: #{tpu_custom_call.1} parent=5 // pred_check_branch
        %827 = sbr.rel (%p825) target = $region68
      $region67: #{tpu_custom_call.1} parent=5 // pred_region
        %s828 = ssub.s32 %s14, 2
      $region68: #{tpu_custom_call.1} parent=5 // pred_fallthru
        _
    $region6: #{tpu_custom_call.1} parent=1 // loop_footer
      %s18 = sadd.s32 1, %s14
    $region7: #{tpu_custom_call.1} parent=1 // loop_footer_branch
      %13 = sbr.rel target = $region3
    $region8: #{tpu_custom_call.1} parent=1 // loop_exit
      _
    %829 = vsyncpa [#allocation4], 1
    %s830 = scalar_lea.sflag [#allocation4], 1
    %831 = vsyncpa %s830, 1
    %832 = vsyncpa [#allocation7], 1
    %s833 = scalar_lea.sflag [#allocation7], 1
    %834 = vsyncpa %s833, 1
    %835 = vsyncpa [#allocation5], 1
    %s836 = scalar_lea.sflag [#allocation5], 1
    %837 = vsyncpa %s836, 1

</llo_original>
